<compile_context>
chip_gen: v5e
topology: v5e:2x2
jax: 0.10.0
libtpu: 0.0.40
codegen_flags: <defaults>
</compile_context>

<pallas_src>
import math
import functools

import jax
import jax.numpy as jnp
from jax.experimental import pallas as pl
from jax.experimental.pallas import tpu as pltpu


def _round_up(x, m):
    return ((x + m - 1) // m) * m


# ----------------------------------------------------------------------------
# Kernel
# ----------------------------------------------------------------------------
def _make_packed_mlp_kernel(relu_after, d_pad):
    """Kernel over one (tb, d_pad) batch tile.

    p_ref layout: (n_layers, d_pad + 8, d_pad); for layer l,
      rows [0, d_pad)  -> W_l  (zero padded to d_pad x d_pad)
      row  d_pad       -> b_l  (zero padded to d_pad)
    Padded lanes of the activation stay exactly zero through every layer
    (zero weight columns + zero bias), so padding never leaks into the real
    outputs.
    """
    n_layers = len(relu_after)

    def kernel(x_ref, p_ref, o_ref):
        h = x_ref[...]                                    # (tb, d_pad) f32
        for l in range(n_layers):
            w = p_ref[l, :d_pad, :]                       # (d_pad, d_pad) bf16
            b = p_ref[l, d_pad:d_pad + 1, :]              # (1, d_pad)     bf16
            # MXU: bf16 x bf16 -> f32 accumulation.
            h = jnp.dot(h.astype(w.dtype), w,
                        preferred_element_type=jnp.float32)
            # Bias add / ReLU kept in f32 (v5e VPU has no native bf16).
            h = h + b.astype(jnp.float32)
            if relu_after[l]:
                h = jnp.maximum(h, 0.0)
        o_ref[...] = h                                    # unmasked 128-lane store

    return kernel


# ----------------------------------------------------------------------------
# Wrapper
# ----------------------------------------------------------------------------
@functools.partial(
    jax.jit,
    static_argnames=("relu_after", "input_dim", "output_dim", "d_pad",
                     "tile_batch"))
def mindmap_actor_forward(x, packed_params, *, relu_after, input_dim,
                          output_dim, d_pad, tile_batch=128):
    """MindmapActor.forward: y = MLP(x).

    x:             (batch, input_dim) float32
    packed_params: (n_layers, d_pad + 8, d_pad) bf16 packed weights + biases
    """
    batch = x.shape[0]
    n_layers = packed_params.shape[0]

    # Batch tile: 128 rows fills an MXU pass on every generation; >=8 sublanes.
    tb = max(8, min(tile_batch, _round_up(batch, 8)))
    b_pad = _round_up(batch, tb)

    # Zero-pad batch to a tile multiple and features to the lane-dense width.
    x_pad = jnp.zeros((b_pad, d_pad), jnp.float32)
    x_pad = x_pad.at[:batch, :input_dim].set(x.astype(jnp.float32))

    kernel = _make_packed_mlp_kernel(relu_after, d_pad)

    out_pad = pl.pallas_call(
        kernel,
        out_shape=jax.ShapeDtypeStruct((b_pad, d_pad), jnp.float32),
        grid=(b_pad // tb,),
        in_specs=[
            # x: one (tb, d_pad) tile per grid step.
            pl.BlockSpec((tb, d_pad), lambda i: (i, 0)),
            # packed params: constant block index -> DMA'd once, VMEM-resident.
            pl.BlockSpec((n_layers, d_pad + 8, d_pad), lambda i: (0, 0, 0)),
        ],
        out_specs=pl.BlockSpec((tb, d_pad), lambda i: (i, 0)),
        compiler_params=pltpu.CompilerParams(
            dimension_semantics=("parallel",)),   # shard batch across TCs (v7x)
    )(x_pad, packed_params)

    return out_pad[:batch, :output_dim]


# ----------------------------------------------------------------------------
# Parameter construction (mirrors MindmapActor.__init__ network build)
# ----------------------------------------------------------------------------
def init_linear_params(key, in_dim, out_dim):
    """Deterministic PyTorch-style nn.Linear init (uniform +/- 1/sqrt(in_dim))."""
    kw, kb = jax.random.split(key)
    bound = 1.0 / math.sqrt(in_dim)
    # Stored as (in, out) == transpose of PyTorch's (out, in) weight.
    w = jax.random.uniform(kw, (in_dim, out_dim), jnp.float32, -bound, bound)
    b = jax.random.uniform(kb, (out_dim,), jnp.float32, -bound, bound)
    return w, b


def build_mindmap_actor(key, num_components, num_states, num_actions,
                        architecture, checkpoint_suffix="actor",
                        param_dtype=jnp.bfloat16):
    """Build packed params + static config for the Pallas forward pass."""
    input_dim = num_states * num_components
    if checkpoint_suffix == "actor":
        output_dim = num_components * num_actions
    else:
        output_dim = 1

    # get_net_dims(): [input] + [ints in arch] + [output], pairwise zipped.
    hidden = [n for n in architecture if isinstance(n, int)]
    dims = [input_dim] + hidden + [output_dim]
    net_dims = list(zip(dims, dims[1:]))

    # Which Linear layers are followed by an activation (walk the arch list;
    # final Linear never has one).
    relu_after = []
    li = -1
    for layer in architecture:
        if isinstance(layer, int):
            relu_after.append(False)
            li += 1
        else:
            assert layer == "relu", f"activation {layer} not supported"
            assert li >= 0, "activation before any Linear layer"
            relu_after[li] = True
    relu_after.append(False)

    # Raw per-layer f32 params (kept for the reference check).
    params = []
    keys = jax.random.split(key, len(net_dims))
    for k, (di, do) in zip(keys, net_dims):
        params.append(init_linear_params(k, di, do))

    # Pack everything into one lane-dense buffer: weights zero-padded to
    # (d_pad, d_pad), bias in row d_pad (rows d_pad+1..d_pad+7 zero, to keep
    # the sublane count a multiple of 8).
    d_pad = _round_up(max(dims), 128)
    n_layers = len(net_dims)
    packed = jnp.zeros((n_layers, d_pad + 8, d_pad), jnp.float32)
    for l, ((di, do), (w, b)) in enumerate(zip(net_dims, params)):
        packed = packed.at[l, :di, :do].set(w)
        packed = packed.at[l, d_pad, :do].set(b)
    packed = packed.astype(param_dtype)

    cfg = dict(relu_after=tuple(relu_after), input_dim=input_dim,
               output_dim=output_dim, d_pad=d_pad, tile_batch=128)
    return packed, tuple(params), cfg


# ----------------------------------------------------------------------------
# Demo / self-check
# ----------------------------------------------------------------------------
if __name__ == "__main__":
    num_components = 4
    num_states = 8
    num_actions = 3
    architecture = [64, "relu", 32, "relu"]
    # batch >= 256 to amortize the fixed pallas_call / DMA-descriptor overhead
    # and exercise the batch grid (2 tiles of 128 rows).
    batch = 256

    param_dtype = jnp.bfloat16

    key = jax.random.PRNGKey(0)
    k_params, k_x = jax.random.split(key)

    packed, params, cfg = build_mindmap_actor(
        k_params, num_components, num_states, num_actions, architecture,
        param_dtype=param_dtype)

    x = jax.random.normal(k_x, (batch, cfg["input_dim"]), jnp.float32)

    out = mindmap_actor_forward(x, packed, **cfg)
    out = jax.block_until_ready(out)

    # Pure-JAX reference with the same numerics (bf16 MXU operands, f32 accum,
    # f32 bias add / ReLU), outside Pallas.
    relu_after = cfg["relu_after"]
    h = x
    for (w, b), act in zip(params, relu_after):
        wq = w.astype(param_dtype)
        bq = b.astype(param_dtype).astype(jnp.float32)
        h = jnp.dot(h.astype(param_dtype), wq,
                    preferred_element_type=jnp.float32) + bq
        if act:
            h = jnp.maximum(h, 0.0)
    ref = h

    assert out.shape == (batch, cfg["output_dim"]), out.shape
    assert jnp.allclose(out, ref, atol=1e-2, rtol=1e-2), (
        float(jnp.max(jnp.abs(out - ref))))

    # transform_with_softmax / Categorical is a sampling utility, not part of
    # forward(); not implemented in the kernel.
    # TODO(synk): optimizer / lr scheduler / checkpoint I/O are training glue,
    # not part of the forward pass.

    print("KERNEL_OK")
</pallas_src>

<mosaic_0001>
module attributes {stable_mosaic.version = 11 : i64} {
  func.func @kernel(%arg0: i32, %arg1: memref<128x128xf32, #tpu.memory_space<vmem>>, %arg2: memref<3x136x128xbf16, #tpu.memory_space<vmem>>, %arg3: memref<128x128xf32, #tpu.memory_space<vmem>>) attributes {dimension_semantics = [#tpu.dimension_semantics<parallel>], iteration_bounds = array<i64: 2>, scalar_prefetch = 0 : i64, scratch_operands = 0 : i64, tpu.core_type = #tpu.core_type<tc>, window_params = [{transform_indices = @transform_0, window_bounds = array<i64: 128, 128>}, {pipeline_mode = #tpu.pipeline_mode<synchronous>, transform_indices = @transform_1, window_bounds = array<i64: 3, 136, 128>}, {transform_indices = @transform_2, window_bounds = array<i64: 128, 128>}]} {
    %c0 = arith.constant 0 : index
    %c0_0 = arith.constant 0 : index
    %0 = vector.load %arg1[%c0, %c0_0] : memref<128x128xf32, #tpu.memory_space<vmem>>, vector<128x128xf32>
    %c0_1 = arith.constant 0 : index
    %c0_2 = arith.constant 0 : index
    %c0_3 = arith.constant 0 : index
    %1 = vector.load %arg2[%c0_1, %c0_2, %c0_3] : memref<3x136x128xbf16, #tpu.memory_space<vmem>>, vector<1x128x128xbf16>
    %2 = vector.shape_cast %1 : vector<1x128x128xbf16> to vector<128x128xbf16>
    %c0_4 = arith.constant 0 : index
    %c128 = arith.constant 128 : index
    %c0_5 = arith.constant 0 : index
    %3 = vector.load %arg2[%c0_4, %c128, %c0_5] : memref<3x136x128xbf16, #tpu.memory_space<vmem>>, vector<1x1x128xbf16>
    %4 = vector.shape_cast %3 : vector<1x1x128xbf16> to vector<1x128xbf16>
    %5 = arith.truncf %0 : vector<128x128xf32> to vector<128x128xbf16>
    %cst = arith.constant dense<0.000000e+00> : vector<128x128xf32>
    %6 = tpu.matmul %5, %2, %cst {dimension_numbers = #tpu.dot_dimension_numbers<[1], [0], [0], [1], [0, 0, 1, 1], [], []>} : vector<128x128xbf16>, vector<128x128xbf16>, vector<128x128xf32> -> vector<128x128xf32>
    %7 = arith.extf %4 : vector<1x128xbf16> to vector<1x128xf32>
    %8 = vector.broadcast %7 : vector<1x128xf32> to vector<128x128xf32>
    %9 = arith.addf %6, %8 : vector<128x128xf32>
    %cst_6 = arith.constant 0.000000e+00 : f32
    %10 = vector.broadcast %cst_6 : f32 to vector<128x128xf32>
    %11 = arith.maximumf %9, %10 : vector<128x128xf32>
    %c1 = arith.constant 1 : index
    %c0_7 = arith.constant 0 : index
    %c0_8 = arith.constant 0 : index
    %12 = vector.load %arg2[%c1, %c0_7, %c0_8] : memref<3x136x128xbf16, #tpu.memory_space<vmem>>, vector<1x128x128xbf16>
    %13 = vector.shape_cast %12 : vector<1x128x128xbf16> to vector<128x128xbf16>
    %c1_9 = arith.constant 1 : index
    %c128_10 = arith.constant 128 : index
    %c0_11 = arith.constant 0 : index
    %14 = vector.load %arg2[%c1_9, %c128_10, %c0_11] : memref<3x136x128xbf16, #tpu.memory_space<vmem>>, vector<1x1x128xbf16>
    %15 = vector.shape_cast %14 : vector<1x1x128xbf16> to vector<1x128xbf16>
    %16 = arith.truncf %11 : vector<128x128xf32> to vector<128x128xbf16>
    %cst_12 = arith.constant dense<0.000000e+00> : vector<128x128xf32>
    %17 = tpu.matmul %16, %13, %cst_12 {dimension_numbers = #tpu.dot_dimension_numbers<[1], [0], [0], [1], [0, 0, 1, 1], [], []>} : vector<128x128xbf16>, vector<128x128xbf16>, vector<128x128xf32> -> vector<128x128xf32>
    %18 = arith.extf %15 : vector<1x128xbf16> to vector<1x128xf32>
    %19 = vector.broadcast %18 : vector<1x128xf32> to vector<128x128xf32>
    %20 = arith.addf %17, %19 : vector<128x128xf32>
    %cst_13 = arith.constant 0.000000e+00 : f32
    %21 = vector.broadcast %cst_13 : f32 to vector<128x128xf32>
    %22 = arith.maximumf %20, %21 : vector<128x128xf32>
    %c2 = arith.constant 2 : index
    %c0_14 = arith.constant 0 : index
    %c0_15 = arith.constant 0 : index
    %23 = vector.load %arg2[%c2, %c0_14, %c0_15] : memref<3x136x128xbf16, #tpu.memory_space<vmem>>, vector<1x128x128xbf16>
    %24 = vector.shape_cast %23 : vector<1x128x128xbf16> to vector<128x128xbf16>
    %c2_16 = arith.constant 2 : index
    %c128_17 = arith.constant 128 : index
    %c0_18 = arith.constant 0 : index
    %25 = vector.load %arg2[%c2_16, %c128_17, %c0_18] : memref<3x136x128xbf16, #tpu.memory_space<vmem>>, vector<1x1x128xbf16>
    %26 = vector.shape_cast %25 : vector<1x1x128xbf16> to vector<1x128xbf16>
    %27 = arith.truncf %22 : vector<128x128xf32> to vector<128x128xbf16>
    %cst_19 = arith.constant dense<0.000000e+00> : vector<128x128xf32>
    %28 = tpu.matmul %27, %24, %cst_19 {dimension_numbers = #tpu.dot_dimension_numbers<[1], [0], [0], [1], [0, 0, 1, 1], [], []>} : vector<128x128xbf16>, vector<128x128xbf16>, vector<128x128xf32> -> vector<128x128xf32>
    %29 = arith.extf %26 : vector<1x128xbf16> to vector<1x128xf32>
    %30 = vector.broadcast %29 : vector<1x128xf32> to vector<128x128xf32>
    %31 = arith.addf %28, %30 : vector<128x128xf32>
    %c0_20 = arith.constant 0 : index
    %c0_21 = arith.constant 0 : index
    %32 = vector.load %arg3[%c0_20, %c0_21] : memref<128x128xf32, #tpu.memory_space<vmem>>, vector<128x128xf32>
    tpu.vector_store %arg3[%c0_20, %c0_21], %31 {strides = array<i32>} : memref<128x128xf32, #tpu.memory_space<vmem>>, vector<128x128xf32>,
    return
  }
  func.func @transform_0(%arg0: i32) -> (i32, i32) {
    %c0_i32 = arith.constant 0 : i32
    %c0_i32_0 = arith.constant 0 : i32
    return %arg0, %c0_i32 : i32, i32
  }
  func.func @transform_1(%arg0: i32) -> (i32, i32, i32) {
    %c0_i32 = arith.constant 0 : i32
    %c0_i32_0 = arith.constant 0 : i32
    %c0_i32_1 = arith.constant 0 : i32
    %c0_i32_2 = arith.constant 0 : i32
    return %c0_i32, %c0_i32_0, %c0_i32_1 : i32, i32, i32
  }
  func.func @transform_2(%arg0: i32) -> (i32, i32) {
    %c0_i32 = arith.constant 0 : i32
    %c0_i32_0 = arith.constant 0 : i32
    return %arg0, %c0_i32 : i32, i32
  }
}

</mosaic_0001>

<llo_original>
// kernel: mindmap_actor_forward.1
$region0: #{mindmap_actor_forward.1}
  #allocation0 [shape = 'u32[]', space=smem, size = 0x4, offset = 0x4, fixed_abs, tag = 'smem constant byte address 0x4 - core index']
  #allocation1 [shape = 'u32[72,128]{1,0:T(1,128)}', space=vmem, size = 0x9000, scoped, tag = 'internal scratch']
  %s0 = inlined_call_operand.vmem [shape: f32[256,128], index: 0, kind: input, shape index: {}]
  %s1 = inlined_call_operand.vmem [shape: bf16[3,136,128], index: 1, kind: input, shape index: {}]
  %s2 = inlined_call_operand.vmem [shape: f32[256,128], index: 2, kind: output, shape index: {}]
  %s3 = sld [smem:[#allocation0]]
  $region41: #{mindmap_actor_forward.1} parent=0
    _
  %s5 = ssub.s32 1, %s3
  %s6 = scalar_select 0, %s5, %s3
  loop: start=0, step=1, limit=4
  $region2: #{mindmap_actor_forward.1} parent=0 // loop_pre_header
    _
  $region3: #{mindmap_actor_forward.1} parent=0 // loop_header
    %s8 = sphi 0, %s12
    %p9 = scmp.ge.s32.totalorder %s8, 4
    %s18 = sphi 0, %s20
    %s21 = sphi 0, %s18
    %s22 = sphi 0, %s21
    %s38 = sphi 0, %s22
    %s42 = sphi 0, %s42
    %s44 = sphi 0, %s42
    %s45 = sphi 0, %s44
    %s59 = sphi 0, %s45
    %s65 = sphi 0, %s67
    %s68 = sphi 0, %s65
    %s69 = sphi 0, %s68
    %s85 = sphi 0, %s69
  $region4: #{mindmap_actor_forward.1} parent=0 // loop_header_branch
    %11 = sbr.rel (%p9) target = $region8
  $region5: #{mindmap_actor_forward.1} parent=0 // loop_body
    %s13 = ssub.s32 %s8, 1
    %s14 = ssub.s32 %s8, 2
    %s15 = sadd.s32 %s8, 1
    %s16 = ssub.s32 %s8, %s15
    %p17 = scmp.eq.s32.totalorder %s16, 0
    %s19 = sadd.s32 %s18, 1
    %s20 = scalar_select %p17, %s18, %s19
    %p23 = pneg %p17
    %p24 = scmp.eq.s32.totalorder %s8, 1
    %p25 = por %p23, %p24
    %p26 = scmp.ne.s32.totalorder %s18, %s21
    %p27 = scmp.eq.s32.totalorder %s8, 0
    %p28 = por %p26, %p27
    %p29 = scmp.ne.s32.totalorder %s18, %s21
    %p30 = scmp.eq.s32.totalorder %s13, 1
    %p31 = por %p29, %p30
    %p32 = scmp.ne.s32.totalorder %s21, %s22
    %p33 = scmp.eq.s32.totalorder %s13, 0
    %p34 = por %p32, %p33
    %p35 = scmp.ne.s32.totalorder %s21, %s22
    %p36 = scmp.eq.s32.totalorder %s14, 1
    %p37 = por %p35, %p36
    %p39 = scmp.ne.s32.totalorder %s22, %s38
    %p40 = scmp.eq.s32.totalorder %s14, 0
    %p41 = por %p39, %p40
    %s43 = sadd.s32 %s42, 1
    %p46 = scmp.eq.s32.totalorder %s8, 1
    %p47 = scmp.ne.s32.totalorder %s42, %s44
    %p48 = scmp.eq.s32.totalorder %s8, 0
    %p49 = por %p47, %p48
    %p50 = scmp.ne.s32.totalorder %s42, %s44
    %p51 = scmp.eq.s32.totalorder %s13, 1
    %p52 = por %p50, %p51
    %p53 = scmp.ne.s32.totalorder %s44, %s45
    %p54 = scmp.eq.s32.totalorder %s13, 0
    %p55 = por %p53, %p54
    %p56 = scmp.ne.s32.totalorder %s44, %s45
    %p57 = scmp.eq.s32.totalorder %s14, 1
    %p58 = por %p56, %p57
    %p60 = scmp.ne.s32.totalorder %s45, %s59
    %p61 = scmp.eq.s32.totalorder %s14, 0
    %p62 = por %p60, %p61
    %s63 = ssub.s32 %s8, %s15
    %p64 = scmp.eq.s32.totalorder %s63, 0
    %s66 = sadd.s32 %s65, 1
    %s67 = scalar_select %p64, %s65, %s66
    %p70 = pneg %p64
    %p71 = scmp.eq.s32.totalorder %s8, 1
    %p72 = por %p70, %p71
    %p73 = scmp.ne.s32.totalorder %s65, %s68
    %p74 = scmp.eq.s32.totalorder %s8, 0
    %p75 = por %p73, %p74
    %p76 = scmp.ne.s32.totalorder %s65, %s68
    %p77 = scmp.eq.s32.totalorder %s13, 1
    %p78 = por %p76, %p77
    %p79 = scmp.ne.s32.totalorder %s68, %s69
    %p80 = scmp.eq.s32.totalorder %s13, 0
    %p81 = por %p79, %p80
    %p82 = scmp.ne.s32.totalorder %s68, %s69
    %p83 = scmp.eq.s32.totalorder %s14, 1
    %p84 = por %p82, %p83
    %p86 = scmp.ne.s32.totalorder %s69, %s85
    %p87 = scmp.eq.s32.totalorder %s14, 0
    %p88 = por %p86, %p87
    %p89 = scmp.le.s32.totalorder 1, %s8
    %p90 = scmp.lt.s32.totalorder %s8, 3
    %p91 = pnand %p89, %p90
    %p92 = pneg %p91
    // Predicated region
    $region9: #{mindmap_actor_forward.1} parent=5 // pred_check
      _
    $region10: #{mindmap_actor_forward.1} parent=5 // pred_check_branch
      %94 = sbr.rel (%p91) target = $region12
    $region11: #{mindmap_actor_forward.1} parent=5 // pred_region
      %s95 = ssub.s32 %s8, 1
      // Predicated region
      $region13: #{mindmap_actor_forward.1} parent=11 // pred_check
        %p96 = pneg %p55
      $region14: #{mindmap_actor_forward.1} parent=11 // pred_check_branch
        %98 = sbr.rel (%p96) target = $region16
      $region15: #{mindmap_actor_forward.1} parent=11 // pred_region
        _
      $region16: #{mindmap_actor_forward.1} parent=11 // pred_fallthru
        _
    $region12: #{mindmap_actor_forward.1} parent=5 // pred_fallthru
      _
    %p99 = scmp.lt.s32.totalorder %s8, 2
    // Predicated region
    $region17: #{mindmap_actor_forward.1} parent=5 // pred_check
      %p100 = pneg %p99
    $region18: #{mindmap_actor_forward.1} parent=5 // pred_check_branch
      %102 = sbr.rel (%p100) target = $region20
    $region19: #{mindmap_actor_forward.1} parent=5 // pred_region
      // Predicated region
      $region21: #{mindmap_actor_forward.1} parent=19 // pred_check
        %p103 = pneg %p28
      $region22: #{mindmap_actor_forward.1} parent=19 // pred_check_branch
        %105 = sbr.rel (%p103) target = $region24
      $region23: #{mindmap_actor_forward.1} parent=19 // pred_region
        %s106 = smul.u32 16, %s8
        %p107 = scmp.lt.s32.totalorder %s106, 31
        %s108 = scalar_select %p107, %s106, 31
        %s109 = smul.addr %s108, 8
        %s110 = scalar_lea.vmem %s0, %s109
        %s111 = smul.u32 16, %s8
      $region24: #{mindmap_actor_forward.1} parent=19 // pred_fallthru
        _
    $region20: #{mindmap_actor_forward.1} parent=5 // pred_fallthru
      _
    %p112 = scmp.le.s32.totalorder 1, %s8
    %p113 = scmp.lt.s32.totalorder %s8, 3
    %p114 = pnand %p112, %p113
    %p115 = pneg %p114
    // Predicated region
    $region25: #{mindmap_actor_forward.1} parent=5 // pred_check
      _
    $region26: #{mindmap_actor_forward.1} parent=5 // pred_check_branch
      %117 = sbr.rel (%p114) target = $region28
    $region27: #{mindmap_actor_forward.1} parent=5 // pred_region
      %s118 = ssub.s32 %s8, 1
      %s119 = smul.u32 16, %s13
      %p120 = scmp.lt.s32.totalorder %s119, 31
      %s121 = scalar_select %p120, %s119, 31
      %s122 = smul.addr %s121, 8
      %s123 = scalar_lea.vmem %s0, %s122
      %p124 = pneg %p34
      %p125 = pneg %p31
      %p126 = pneg %p55
      %p127 = pneg %p52
      %p128 = pneg %p81
      %p129 = pneg %p78
      %s130 = smul.u32 16, %s13
      %p131 = scmp.lt.s32.totalorder %s130, 31
      %s132 = scalar_select %p131, %s130, 31
      %s133 = smul.addr %s132, 8
      %s134 = scalar_lea.vmem %s2, %s133
      %s135 = smul.u32 16, %s13
      %p136 = scmp.lt.s32.totalorder %s135, 31
      %s137 = scalar_select %p136, %s135, 31
      %s138 = smul.addr %s137, 8
      %s139 = scalar_lea.vmem %s0, %s138
      %s140 = smul.u32 16, %s13
      %s141 = smul.u32 16, %s13
      %p142 = scmp.lt.s32.totalorder %s141, 31
      %s143 = scalar_select %p142, %s141, 31
      %s144 = smul.addr %s143, 8
      %s145 = scalar_lea.vmem %s2, %s144
      %s146 = smul.u32 16, %s13
      %v147 = vld [vmem:[%s139] sm:$0xff]
      %v148 = vld [vmem:[%s139 + $0x8] sm:$0xff]
      %v149 = vld [vmem:[%s139 + $0x10] sm:$0xff]
      %v150 = vld [vmem:[%s139 + $0x18] sm:$0xff]
      %v151 = vld [vmem:[%s139 + $0x20] sm:$0xff]
      %v152 = vld [vmem:[%s139 + $0x28] sm:$0xff]
      %v153 = vld [vmem:[%s139 + $0x30] sm:$0xff]
      %v154 = vld [vmem:[%s139 + $0x38] sm:$0xff]
      %v155 = vld [vmem:[%s139 + $0x40] sm:$0xff]
      %v156 = vld [vmem:[%s139 + $0x48] sm:$0xff]
      %v157 = vld [vmem:[%s139 + $0x50] sm:$0xff]
      %v158 = vld [vmem:[%s139 + $0x58] sm:$0xff]
      %v159 = vld [vmem:[%s139 + $0x60] sm:$0xff]
      %v160 = vld [vmem:[%s139 + $0x68] sm:$0xff]
      %v161 = vld [vmem:[%s139 + $0x70] sm:$0xff]
      %v162 = vld [vmem:[%s139 + $0x78] sm:$0xff]
      %v163 = vld [vmem:[%s1] sm:$0xf]
      %v164 = vld [vmem:[%s1 + $0x4] sm:$0xf]
      %v165 = vld [vmem:[%s1 + $0x8] sm:$0xf]
      %v166 = vld [vmem:[%s1 + $0xc] sm:$0xf]
      %v167 = vld [vmem:[%s1 + $0x10] sm:$0xf]
      %v168 = vld [vmem:[%s1 + $0x14] sm:$0xf]
      %v169 = vld [vmem:[%s1 + $0x18] sm:$0xf]
      %v170 = vld [vmem:[%s1 + $0x1c] sm:$0xf]
      %v171 = vld [vmem:[%s1 + $0x20] sm:$0xf]
      %v172 = vld [vmem:[%s1 + $0x24] sm:$0xf]
      %v173 = vld [vmem:[%s1 + $0x28] sm:$0xf]
      %v174 = vld [vmem:[%s1 + $0x2c] sm:$0xf]
      %v175 = vld [vmem:[%s1 + $0x30] sm:$0xf]
      %v176 = vld [vmem:[%s1 + $0x34] sm:$0xf]
      %v177 = vld [vmem:[%s1 + $0x38] sm:$0xf]
      %v178 = vld [vmem:[%s1 + $0x3c] sm:$0xf]
      %v179 = vld [vmem:[%s1 + $0x40] sm:$0x1]
      %v180 = vpack.c.bf16 %v148, %v147
      %v181 = vpack.c.bf16 %v150, %v149
      %v182 = vpack.c.bf16 %v152, %v151
      %v183 = vpack.c.bf16 %v154, %v153
      %v184 = vpack.c.bf16 %v156, %v155
      %v185 = vpack.c.bf16 %v158, %v157
      %v186 = vpack.c.bf16 %v160, %v159
      %v187 = vpack.c.bf16 %v162, %v161
      %v188 = vunpack.c.l.bf16 %v179
      %v189 = vperm.slane %v188, 0
      %v206 = vunpack.c.l.b16 %v163
      %v207 = vunpack.c.l.b16 %v164
      %v208 = vunpack.c.l.b16 %v165
      %v209 = vunpack.c.l.b16 %v166
      %v210 = vunpack.c.l.b16 %v167
      %v211 = vunpack.c.l.b16 %v168
      %v212 = vunpack.c.l.b16 %v169
      %v213 = vunpack.c.l.b16 %v170
      %v214 = vunpack.c.l.b16 %v171
      %v215 = vunpack.c.l.b16 %v172
      %v216 = vunpack.c.l.b16 %v173
      %v217 = vunpack.c.l.b16 %v174
      %v218 = vunpack.c.l.b16 %v175
      %v219 = vunpack.c.l.b16 %v176
      %v220 = vunpack.c.l.b16 %v177
      %v221 = vunpack.c.l.b16 %v178
      %v222 = vpack.c.b16 %v207, %v206
      %v223 = vpack.c.b16 %v209, %v208
      %v224 = vpack.c.b16 %v211, %v210
      %v225 = vpack.c.b16 %v213, %v212
      %v226 = vpack.c.b16 %v215, %v214
      %v227 = vpack.c.b16 %v217, %v216
      %v228 = vpack.c.b16 %v219, %v218
      %v229 = vpack.c.b16 %v221, %v220
      %238 = vmatpush.bf16.msra.mxu0 %v229
      %239 = vmatpush.bf16.msra.mxu0 %v228
      %240 = vmatpush.bf16.msra.mxu0 %v227
      %241 = vmatpush.bf16.msra.mxu0 %v226
      %242 = vmatpush.bf16.msra.mxu0 %v225
      %243 = vmatpush.bf16.msra.mxu0 %v224
      %244 = vmatpush.bf16.msra.mxu0 %v223
      %245 = vmatpush.bf16.msra.mxu0 %v222
      %246 = vmatmul.bf16.gmra.mxu0 %v180
      %v247 = vpop.f32.mrf.mxu0
      %v248 = vadd.f32 %v189, %v247
      %v249 = vpop.f32.mrf.mxu0
      %v250 = vadd.f32 %v189, %v249
      %251 = vmatmul.bf16.gmra.mxu0 %v181
      %v252 = vpop.f32.mrf.mxu0
      %v253 = vadd.f32 %v189, %v252
      %v254 = vpop.f32.mrf.mxu0
      %v255 = vadd.f32 %v189, %v254
      %256 = vmatmul.bf16.gmra.mxu0 %v182
      %v257 = vpop.f32.mrf.mxu0
      %v258 = vadd.f32 %v189, %v257
      %v259 = vpop.f32.mrf.mxu0
      %v260 = vadd.f32 %v189, %v259
      %261 = vmatmul.bf16.gmra.mxu0 %v183
      %v262 = vpop.f32.mrf.mxu0
      %v263 = vadd.f32 %v189, %v262
      %v264 = vpop.f32.mrf.mxu0
      %v265 = vadd.f32 %v189, %v264
      %266 = vmatmul.bf16.gmra.mxu0 %v184
      %v267 = vpop.f32.mrf.mxu0
      %v268 = vadd.f32 %v189, %v267
      %v269 = vpop.f32.mrf.mxu0
      %v270 = vadd.f32 %v189, %v269
      %271 = vmatmul.bf16.gmra.mxu0 %v185
      %v272 = vpop.f32.mrf.mxu0
      %v273 = vadd.f32 %v189, %v272
      %v274 = vpop.f32.mrf.mxu0
      %v275 = vadd.f32 %v189, %v274
      %276 = vmatmul.bf16.gmra.mxu0 %v186
      %v277 = vpop.f32.mrf.mxu0
      %v278 = vadd.f32 %v189, %v277
      %v279 = vpop.f32.mrf.mxu0
      %v280 = vadd.f32 %v189, %v279
      %281 = vmatmul.bf16.gmra.mxu0 %v187
      %v282 = vpop.f32.mrf.mxu0
      %v283 = vadd.f32 %v189, %v282
      %v284 = vpop.f32.mrf.mxu0
      %v285 = vadd.f32 %v189, %v284
      %286 = vdwg.mxu0
      %v287 = vmax.f32 %v248, 0.0
      %v288 = vmax.f32 %v250, 0.0
      %v289 = vmax.f32 %v253, 0.0
      %v290 = vmax.f32 %v255, 0.0
      %v291 = vmax.f32 %v258, 0.0
      %v292 = vmax.f32 %v260, 0.0
      %v293 = vmax.f32 %v263, 0.0
      %v294 = vmax.f32 %v265, 0.0
      %v295 = vmax.f32 %v268, 0.0
      %v296 = vmax.f32 %v270, 0.0
      %v297 = vmax.f32 %v273, 0.0
      %v298 = vmax.f32 %v275, 0.0
      %v299 = vmax.f32 %v278, 0.0
      %v300 = vmax.f32 %v280, 0.0
      %v301 = vmax.f32 %v283, 0.0
      %v302 = vmax.f32 %v285, 0.0
      %s303 = scalar_lea.vmem %s1, 68
      %v304 = vld [vmem:[%s303] sm:$0xf]
      %v305 = vld [vmem:[%s303 + $0x4] sm:$0xf]
      %v306 = vld [vmem:[%s303 + $0x8] sm:$0xf]
      %v307 = vld [vmem:[%s303 + $0xc] sm:$0xf]
      %v308 = vld [vmem:[%s303 + $0x10] sm:$0xf]
      %v309 = vld [vmem:[%s303 + $0x14] sm:$0xf]
      %v310 = vld [vmem:[%s303 + $0x18] sm:$0xf]
      %v311 = vld [vmem:[%s303 + $0x1c] sm:$0xf]
      %v312 = vld [vmem:[%s303 + $0x20] sm:$0xf]
      %v313 = vld [vmem:[%s303 + $0x24] sm:$0xf]
      %v314 = vld [vmem:[%s303 + $0x28] sm:$0xf]
      %v315 = vld [vmem:[%s303 + $0x2c] sm:$0xf]
      %v316 = vld [vmem:[%s303 + $0x30] sm:$0xf]
      %v317 = vld [vmem:[%s303 + $0x34] sm:$0xf]
      %v318 = vld [vmem:[%s303 + $0x38] sm:$0xf]
      %v319 = vld [vmem:[%s303 + $0x3c] sm:$0xf]
      %v320 = vld [vmem:[%s303 + $0x40] sm:$0x1]
      %v321 = vpack.c.bf16 %v288, %v287
      %v322 = vpack.c.bf16 %v290, %v289
      %v323 = vpack.c.bf16 %v292, %v291
      %v324 = vpack.c.bf16 %v294, %v293
      %v325 = vpack.c.bf16 %v296, %v295
      %v326 = vpack.c.bf16 %v298, %v297
      %v327 = vpack.c.bf16 %v300, %v299
      %v328 = vpack.c.bf16 %v302, %v301
      %v329 = vunpack.c.l.bf16 %v320
      %v330 = vperm.slane %v329, 0
      %v347 = vunpack.c.l.b16 %v304
      %v348 = vunpack.c.l.b16 %v305
      %v349 = vunpack.c.l.b16 %v306
      %v350 = vunpack.c.l.b16 %v307
      %v351 = vunpack.c.l.b16 %v308
      %v352 = vunpack.c.l.b16 %v309
      %v353 = vunpack.c.l.b16 %v310
      %v354 = vunpack.c.l.b16 %v311
      %v355 = vunpack.c.l.b16 %v312
      %v356 = vunpack.c.l.b16 %v313
      %v357 = vunpack.c.l.b16 %v314
      %v358 = vunpack.c.l.b16 %v315
      %v359 = vunpack.c.l.b16 %v316
      %v360 = vunpack.c.l.b16 %v317
      %v361 = vunpack.c.l.b16 %v318
      %v362 = vunpack.c.l.b16 %v319
      %v363 = vpack.c.b16 %v348, %v347
      %v364 = vpack.c.b16 %v350, %v349
      %v365 = vpack.c.b16 %v352, %v351
      %v366 = vpack.c.b16 %v354, %v353
      %v367 = vpack.c.b16 %v356, %v355
      %v368 = vpack.c.b16 %v358, %v357
      %v369 = vpack.c.b16 %v360, %v359
      %v370 = vpack.c.b16 %v362, %v361
      %379 = vmatpush.bf16.msra.mxu0 %v370
      %380 = vmatpush.bf16.msra.mxu0 %v369
      %381 = vmatpush.bf16.msra.mxu0 %v368
      %382 = vmatpush.bf16.msra.mxu0 %v367
      %383 = vmatpush.bf16.msra.mxu0 %v366
      %384 = vmatpush.bf16.msra.mxu0 %v365
      %385 = vmatpush.bf16.msra.mxu0 %v364
      %386 = vmatpush.bf16.msra.mxu0 %v363
      %387 = vmatmul.bf16.gmra.mxu0 %v321
      %v388 = vpop.f32.mrf.mxu0
      %v389 = vadd.f32 %v330, %v388
      %v390 = vpop.f32.mrf.mxu0
      %v391 = vadd.f32 %v330, %v390
      %392 = vmatmul.bf16.gmra.mxu0 %v322
      %v393 = vpop.f32.mrf.mxu0
      %v394 = vadd.f32 %v330, %v393
      %v395 = vpop.f32.mrf.mxu0
      %v396 = vadd.f32 %v330, %v395
      %397 = vmatmul.bf16.gmra.mxu0 %v323
      %v398 = vpop.f32.mrf.mxu0
      %v399 = vadd.f32 %v330, %v398
      %v400 = vpop.f32.mrf.mxu0
      %v401 = vadd.f32 %v330, %v400
      %402 = vmatmul.bf16.gmra.mxu0 %v324
      %v403 = vpop.f32.mrf.mxu0
      %v404 = vadd.f32 %v330, %v403
      %v405 = vpop.f32.mrf.mxu0
      %v406 = vadd.f32 %v330, %v405
      %407 = vmatmul.bf16.gmra.mxu0 %v325
      %v408 = vpop.f32.mrf.mxu0
      %v409 = vadd.f32 %v330, %v408
      %v410 = vpop.f32.mrf.mxu0
      %v411 = vadd.f32 %v330, %v410
      %412 = vmatmul.bf16.gmra.mxu0 %v326
      %v413 = vpop.f32.mrf.mxu0
      %v414 = vadd.f32 %v330, %v413
      %v415 = vpop.f32.mrf.mxu0
      %v416 = vadd.f32 %v330, %v415
      %417 = vmatmul.bf16.gmra.mxu0 %v327
      %v418 = vpop.f32.mrf.mxu0
      %v419 = vadd.f32 %v330, %v418
      %v420 = vpop.f32.mrf.mxu0
      %v421 = vadd.f32 %v330, %v420
      %422 = vmatmul.bf16.gmra.mxu0 %v328
      %v423 = vpop.f32.mrf.mxu0
      %v424 = vadd.f32 %v330, %v423
      %v425 = vpop.f32.mrf.mxu0
      %v426 = vadd.f32 %v330, %v425
      %427 = vdwg.mxu0
      %v428 = vmax.f32 %v389, 0.0
      %v429 = vmax.f32 %v391, 0.0
      %v430 = vmax.f32 %v394, 0.0
      %v431 = vmax.f32 %v396, 0.0
      %v432 = vmax.f32 %v399, 0.0
      %v433 = vmax.f32 %v401, 0.0
      %v434 = vmax.f32 %v404, 0.0
      %v435 = vmax.f32 %v406, 0.0
      %v436 = vmax.f32 %v409, 0.0
      %v437 = vmax.f32 %v411, 0.0
      %v438 = vmax.f32 %v414, 0.0
      %v439 = vmax.f32 %v416, 0.0
      %v440 = vmax.f32 %v419, 0.0
      %v441 = vmax.f32 %v421, 0.0
      %v442 = vmax.f32 %v424, 0.0
      %v443 = vmax.f32 %v426, 0.0
      %s444 = scalar_lea.vmem %s1, 136
      %v445 = vld [vmem:[%s444] sm:$0xf]
      %v446 = vld [vmem:[%s444 + $0x4] sm:$0xf]
      %v447 = vld [vmem:[%s444 + $0x8] sm:$0xf]
      %v448 = vld [vmem:[%s444 + $0xc] sm:$0xf]
      %v449 = vld [vmem:[%s444 + $0x10] sm:$0xf]
      %v450 = vld [vmem:[%s444 + $0x14] sm:$0xf]
      %v451 = vld [vmem:[%s444 + $0x18] sm:$0xf]
      %v452 = vld [vmem:[%s444 + $0x1c] sm:$0xf]
      %v453 = vld [vmem:[%s444 + $0x20] sm:$0xf]
      %v454 = vld [vmem:[%s444 + $0x24] sm:$0xf]
      %v455 = vld [vmem:[%s444 + $0x28] sm:$0xf]
      %v456 = vld [vmem:[%s444 + $0x2c] sm:$0xf]
      %v457 = vld [vmem:[%s444 + $0x30] sm:$0xf]
      %v458 = vld [vmem:[%s444 + $0x34] sm:$0xf]
      %v459 = vld [vmem:[%s444 + $0x38] sm:$0xf]
      %v460 = vld [vmem:[%s444 + $0x3c] sm:$0xf]
      %v461 = vld [vmem:[%s444 + $0x40] sm:$0x1]
      %v462 = vpack.c.bf16 %v429, %v428
      %v463 = vpack.c.bf16 %v431, %v430
      %v464 = vpack.c.bf16 %v433, %v432
      %v465 = vpack.c.bf16 %v435, %v434
      %v466 = vpack.c.bf16 %v437, %v436
      %v467 = vpack.c.bf16 %v439, %v438
      %v468 = vpack.c.bf16 %v441, %v440
      %v469 = vpack.c.bf16 %v443, %v442
      %v470 = vunpack.c.l.bf16 %v461
      %v471 = vperm.slane %v470, 0
      %v488 = vunpack.c.l.b16 %v445
      %v489 = vunpack.c.l.b16 %v446
      %v490 = vunpack.c.l.b16 %v447
      %v491 = vunpack.c.l.b16 %v448
      %v492 = vunpack.c.l.b16 %v449
      %v493 = vunpack.c.l.b16 %v450
      %v494 = vunpack.c.l.b16 %v451
      %v495 = vunpack.c.l.b16 %v452
      %v496 = vunpack.c.l.b16 %v453
      %v497 = vunpack.c.l.b16 %v454
      %v498 = vunpack.c.l.b16 %v455
      %v499 = vunpack.c.l.b16 %v456
      %v500 = vunpack.c.l.b16 %v457
      %v501 = vunpack.c.l.b16 %v458
      %v502 = vunpack.c.l.b16 %v459
      %v503 = vunpack.c.l.b16 %v460
      %v504 = vpack.c.b16 %v489, %v488
      %v505 = vpack.c.b16 %v491, %v490
      %v506 = vpack.c.b16 %v493, %v492
      %v507 = vpack.c.b16 %v495, %v494
      %v508 = vpack.c.b16 %v497, %v496
      %v509 = vpack.c.b16 %v499, %v498
      %v510 = vpack.c.b16 %v501, %v500
      %v511 = vpack.c.b16 %v503, %v502
      %520 = vmatpush.bf16.msra.mxu0 %v511
      %521 = vmatpush.bf16.msra.mxu0 %v510
      %522 = vmatpush.bf16.msra.mxu0 %v509
      %523 = vmatpush.bf16.msra.mxu0 %v508
      %524 = vmatpush.bf16.msra.mxu0 %v507
      %525 = vmatpush.bf16.msra.mxu0 %v506
      %526 = vmatpush.bf16.msra.mxu0 %v505
      %527 = vmatpush.bf16.msra.mxu0 %v504
      %528 = vmatmul.bf16.gmra.mxu0 %v462
      %v529 = vpop.f32.mrf.mxu0
      %v530 = vadd.f32 %v471, %v529
      %v531 = vpop.f32.mrf.mxu0
      %v532 = vadd.f32 %v471, %v531
      %533 = vmatmul.bf16.gmra.mxu0 %v463
      %v534 = vpop.f32.mrf.mxu0
      %v535 = vadd.f32 %v471, %v534
      %v536 = vpop.f32.mrf.mxu0
      %v537 = vadd.f32 %v471, %v536
      %538 = vmatmul.bf16.gmra.mxu0 %v464
      %v539 = vpop.f32.mrf.mxu0
      %v540 = vadd.f32 %v471, %v539
      %v541 = vpop.f32.mrf.mxu0
      %v542 = vadd.f32 %v471, %v541
      %543 = vmatmul.bf16.gmra.mxu0 %v465
      %v544 = vpop.f32.mrf.mxu0
      %v545 = vadd.f32 %v471, %v544
      %v546 = vpop.f32.mrf.mxu0
      %v547 = vadd.f32 %v471, %v546
      %548 = vmatmul.bf16.gmra.mxu0 %v466
      %v549 = vpop.f32.mrf.mxu0
      %v550 = vadd.f32 %v471, %v549
      %v551 = vpop.f32.mrf.mxu0
      %v552 = vadd.f32 %v471, %v551
      %553 = vmatmul.bf16.gmra.mxu0 %v467
      %v554 = vpop.f32.mrf.mxu0
      %v555 = vadd.f32 %v471, %v554
      %v556 = vpop.f32.mrf.mxu0
      %v557 = vadd.f32 %v471, %v556
      %558 = vmatmul.bf16.gmra.mxu0 %v468
      %v559 = vpop.f32.mrf.mxu0
      %v560 = vadd.f32 %v471, %v559
      %v561 = vpop.f32.mrf.mxu0
      %v562 = vadd.f32 %v471, %v561
      %563 = vmatmul.bf16.gmra.mxu0 %v469
      %v564 = vpop.f32.mrf.mxu0
      %v565 = vadd.f32 %v471, %v564
      %v566 = vpop.f32.mrf.mxu0
      %v567 = vadd.f32 %v471, %v566
      %568 = vdwg.mxu0
      %569 = vst [vmem:[%s145] sm:$0xff] %v530
      %570 = vst [vmem:[%s145 + $0x8] sm:$0xff] %v532
      %571 = vst [vmem:[%s145 + $0x10] sm:$0xff] %v535
      %572 = vst [vmem:[%s145 + $0x18] sm:$0xff] %v537
      %573 = vst [vmem:[%s145 + $0x20] sm:$0xff] %v540
      %574 = vst [vmem:[%s145 + $0x28] sm:$0xff] %v542
      %575 = vst [vmem:[%s145 + $0x30] sm:$0xff] %v545
      %576 = vst [vmem:[%s145 + $0x38] sm:$0xff] %v547
      %577 = vst [vmem:[%s145 + $0x40] sm:$0xff] %v550
      %578 = vst [vmem:[%s145 + $0x48] sm:$0xff] %v552
      %579 = vst [vmem:[%s145 + $0x50] sm:$0xff] %v555
      %580 = vst [vmem:[%s145 + $0x58] sm:$0xff] %v557
      %581 = vst [vmem:[%s145 + $0x60] sm:$0xff] %v560
      %582 = vst [vmem:[%s145 + $0x68] sm:$0xff] %v562
      %583 = vst [vmem:[%s145 + $0x70] sm:$0xff] %v565
      %584 = vst [vmem:[%s145 + $0x78] sm:$0xff] %v567
      %s585 = smul.u32 16, %s13
      %p586 = scmp.lt.s32.totalorder %s585, 31
      %s587 = scalar_select %p586, %s585, 31
      %s588 = smul.addr %s587, 8
      %s589 = scalar_lea.vmem %s2, %s588
      // Predicated region
      $region29: #{mindmap_actor_forward.1} parent=27 // pred_check
        %p590 = pneg %p78
      $region30: #{mindmap_actor_forward.1} parent=27 // pred_check_branch
        %592 = sbr.rel (%p590) target = $region32
      $region31: #{mindmap_actor_forward.1} parent=27 // pred_region
        %s593 = smul.u32 16, %s13
      $region32: #{mindmap_actor_forward.1} parent=27 // pred_fallthru
        _
    $region28: #{mindmap_actor_forward.1} parent=5 // pred_fallthru
      _
    %p594 = scmp.le.s32.totalorder 2, %s8
    // Predicated region
    $region33: #{mindmap_actor_forward.1} parent=5 // pred_check
      %p595 = pneg %p594
    $region34: #{mindmap_actor_forward.1} parent=5 // pred_check_branch
      %597 = sbr.rel (%p595) target = $region36
    $region35: #{mindmap_actor_forward.1} parent=5 // pred_region
      %s598 = ssub.s32 %s8, 2
      // Predicated region
      $region37: #{mindmap_actor_forward.1} parent=35 // pred_check
        %p599 = pneg %p84
      $region38: #{mindmap_actor_forward.1} parent=35 // pred_check_branch
        %601 = sbr.rel (%p599) target = $region40
      $region39: #{mindmap_actor_forward.1} parent=35 // pred_region
        %s602 = smul.u32 16, %s14
        %p603 = scmp.lt.s32.totalorder %s602, 31
        %s604 = scalar_select %p603, %s602, 31
        %s605 = smul.addr %s604, 8
        %s606 = scalar_lea.vmem %s2, %s605
      $region40: #{mindmap_actor_forward.1} parent=35 // pred_fallthru
        _
    $region36: #{mindmap_actor_forward.1} parent=5 // pred_fallthru
      _
  $region6: #{mindmap_actor_forward.1} parent=0 // loop_footer
    %s12 = sadd.s32 1, %s8
  $region7: #{mindmap_actor_forward.1} parent=0 // loop_footer_branch
    %7 = sbr.rel target = $region3
  $region8: #{mindmap_actor_forward.1} parent=0 // loop_exit
    _

</llo_original>
